<compile_context>
chip_gen: v6e
topology: v6e:2x2x1
jax: 0.10.0
libtpu: 0.0.40
codegen_flags: <defaults>
</compile_context>

<pallas_src>
import math
import functools

import jax
import jax.numpy as jnp
from jax.experimental import pallas as pl
from jax.experimental.pallas import tpu as pltpu

LN_EPS = 1e-5          # torch.nn.LayerNorm default
MASK_VALUE = -1e30     # additive causal-mask bias (stays in f32)


# ----------------------------- in-kernel helpers -----------------------------

def _layernorm(x, gamma, beta):
    mean = jnp.mean(x, axis=-1, keepdims=True)
    var = jnp.mean((x - mean) ** 2, axis=-1, keepdims=True)
    return (x - mean) * jax.lax.rsqrt(var + LN_EPS) * gamma + beta


def _gelu_exact(x):
    # torch.nn.GELU default (approximate='none', erf form)
    return 0.5 * x * (1.0 + jax.lax.erf(x * (1.0 / math.sqrt(2.0))))


def _const_spec(arr):
    """Whole-array BlockSpec with a constant index_map (grid-invariant weight)."""
    idx_map = {2: lambda b: (0, 0), 3: lambda b: (0, 0, 0)}[arr.ndim]
    return pl.BlockSpec(arr.shape, idx_map)


# ----------------------------- 1) fused embedding ------------------------------

def _embed_kernel(s_ref, a_ref, l_ref, t_ref,
                  ws_ref, bs_ref, wa_ref, ba_ref, wr_ref, br_ref,
                  g_ref, be_ref, o_ref):
    te = t_ref[0]                                               # (T, H) f32
    s_e = (jnp.dot(s_ref[0], ws_ref[...],
                   preferred_element_type=jnp.float32) + bs_ref[...] + te)
    a_e = (jnp.dot(a_ref[0], wa_ref[...],
                   preferred_element_type=jnp.float32) + ba_ref[...] + te)
    # rtg embed is a K==1 linear -> broadcasted multiply instead of a matmul
    r_e = l_ref[0] * wr_ref[...] + br_ref[...] + te             # (T,1)*(1,H)
    g = g_ref[...]
    be = be_ref[...]
    # token order per timestep: (state, rtg, action) == torch.stack((s, r, a), dim=1)
    o_ref[0] = jnp.stack(
        [_layernorm(s_e, g, be), _layernorm(r_e, g, be), _layernorm(a_e, g, be)],
        axis=1)                                                 # (T, 3, H)


def embed_tokens(states, actions, leg_length, time_emb, params):
    B, T, Ds = states.shape
    Da = actions.shape[-1]
    H = time_emb.shape[-1]
    weights = [params["embed_state_w"], params["embed_state_b"],
               params["embed_action_w"], params["embed_action_b"],
               params["embed_rtg_w"], params["embed_rtg_b"],
               params["embed_ln_g"], params["embed_ln_b"]]
    return pl.pallas_call(
        _embed_kernel,
        out_shape=jax.ShapeDtypeStruct((B, T, 3, H), jnp.float32),
        grid=(B,),
        in_specs=[pl.BlockSpec((1, T, Ds), lambda b: (b, 0, 0)),
                  pl.BlockSpec((1, T, Da), lambda b: (b, 0, 0)),
                  pl.BlockSpec((1, T, 1), lambda b: (b, 0, 0)),
                  pl.BlockSpec((1, T, H), lambda b: (b, 0, 0))]
                 + [_const_spec(w) for w in weights],
        out_specs=pl.BlockSpec((1, T, 3, H), lambda b: (b, 0, 0, 0)),
        compiler_params=pltpu.CompilerParams(
            dimension_semantics=("parallel",)),
    )(states, actions, leg_length, time_emb, *weights)


# ----------------------------- 2) fused transformer Block ----------------------

def _block_kernel(x_ref, mask_ref,
                  wqkv_ref, bqkv_ref, wp_ref, bp_ref,
                  g1_ref, be1_ref, w1_ref, b1_ref, w2_ref, b2_ref,
                  g2_ref, be2_ref, o_ref, *, n_heads):
    x = x_ref[0]                                                # (S, H) f32
    S, H = x.shape
    D = H // n_heads
    scale = 1.0 / math.sqrt(D)

    # fused QKV projection: one lane-dense (S, 3H) MXU matmul (bf16 in, f32 acc)
    qkv = (jnp.dot(x.astype(jnp.bfloat16), wqkv_ref[...],
                   preferred_element_type=jnp.float32) + bqkv_ref[...])
    q, k, v = qkv[:, :H], qkv[:, H:2 * H], qkv[:, 2 * H:]

    # head-major (n_heads, S, D) views -> batched MXU contractions
    def heads(z):
        return jnp.stack([z[:, h * D:(h + 1) * D] for h in range(n_heads)],
                         axis=0).astype(jnp.bfloat16)
    qh, kh, vh = heads(q), heads(k), heads(v)

    scores = jnp.einsum("nqd,nkd->nqk", qh, kh,
                        preferred_element_type=jnp.float32) * scale   # (N,S,S) f32
    scores = scores + mask_ref[...]                 # hoisted additive causal bias
    scores = scores - jnp.max(scores, axis=-1, keepdims=True)
    p = jnp.exp(scores)
    p = p * pl.reciprocal(jnp.sum(p, axis=-1, keepdims=True), approx=True)

    att = jnp.einsum("nqk,nkd->nqd", p.astype(jnp.bfloat16), vh,
                     preferred_element_type=jnp.float32)              # (N,S,D)
    # fold output projection per head and sum over heads (no (S,H) concatenate)
    proj = jnp.einsum("nqd,ndh->nqh", att.astype(jnp.bfloat16), wp_ref[...],
                      preferred_element_type=jnp.float32)             # (N,S,H)
    att_out = jnp.sum(proj, axis=0) + bp_ref[...]                     # (S,H)

    x = _layernorm(x + att_out, g1_ref[...], be1_ref[...])

    h1 = (jnp.dot(x.astype(jnp.bfloat16), w1_ref[...],
                  preferred_element_type=jnp.float32) + b1_ref[...])
    h1 = _gelu_exact(h1)
    h2 = (jnp.dot(h1.astype(jnp.bfloat16), w2_ref[...],
                  preferred_element_type=jnp.float32) + b2_ref[...])
    x = _layernorm(x + h2, g2_ref[...], be2_ref[...])

    o_ref[0] = x


def transformer_block(h, mask_bias, blk, n_heads):
    B, S, H = h.shape
    weights = [blk["wqkv"], blk["bqkv"], blk["wp"], blk["bp"],
               blk["ln1_g"], blk["ln1_b"], blk["w1"], blk["b1"],
               blk["w2"], blk["b2"], blk["ln2_g"], blk["ln2_b"]]
    kernel = functools.partial(_block_kernel, n_heads=n_heads)
    return pl.pallas_call(
        kernel,
        out_shape=jax.ShapeDtypeStruct((B, S, H), jnp.float32),
        grid=(B,),
        in_specs=[pl.BlockSpec((1, S, H), lambda b: (b, 0, 0)),
                  _const_spec(mask_bias)]
                 + [_const_spec(w) for w in weights],
        out_specs=pl.BlockSpec((1, S, H), lambda b: (b, 0, 0)),
        # For large h_dim: add vmem_limit_bytes=... here and single-buffer the
        # grid-invariant weights (memory_space=pl.ANY + one manual copy); bf16
        # weight storage already halves their VMEM footprint.
        compiler_params=pltpu.CompilerParams(
            dimension_semantics=("parallel",)),
    )(h, mask_bias, *weights)


# ----------------------------- 3) fused prediction heads -----------------------

def _heads_kernel(h_ref, w_ref, b_ref, state_ref, act_ref, body_ref,
                  *, state_dim, act_dim):
    x = h_ref[0]                                                # (3T, H) f32
    S = x.shape[0]
    T = S // 3
    O = 1 + state_dim + act_dim
    # one fused matmul for all three heads: columns = [rtg | state | action]
    pr = jnp.dot(x, w_ref[...], preferred_element_type=jnp.float32) + b_ref[...]
    pr = pr.reshape(T, 3, O)    # (timestep, token-type, fused head outputs)
    # token types: 0 = state token, 1 = rtg token, 2 = action token
    body_ref[0] = pr[:, 0, 0:1]                                 # predict_rtg(h[:,0])
    state_ref[0] = pr[:, 2, 1:1 + state_dim]                    # predict_state(h[:,2])
    act_ref[0] = jnp.tanh(pr[:, 1, 1 + state_dim:O])            # tanh(predict_action(h[:,1]))


def prediction_heads(h, params, state_dim, act_dim):
    B, S, H = h.shape
    T = S // 3
    kernel = functools.partial(_heads_kernel, state_dim=state_dim, act_dim=act_dim)
    return pl.pallas_call(
        kernel,
        out_shape=(jax.ShapeDtypeStruct((B, T, state_dim), jnp.float32),
                   jax.ShapeDtypeStruct((B, T, act_dim), jnp.float32),
                   jax.ShapeDtypeStruct((B, T, 1), jnp.float32)),
        grid=(B,),
        in_specs=[pl.BlockSpec((1, S, H), lambda b: (b, 0, 0)),
                  _const_spec(params["predict_w"]),
                  _const_spec(params["predict_b"])],
        out_specs=(pl.BlockSpec((1, T, state_dim), lambda b: (b, 0, 0)),
                   pl.BlockSpec((1, T, act_dim), lambda b: (b, 0, 0)),
                   pl.BlockSpec((1, T, 1), lambda b: (b, 0, 0))),
        compiler_params=pltpu.CompilerParams(
            dimension_semantics=("parallel",)),
    )(h, params["predict_w"], params["predict_b"])


# ----------------------------- parameters --------------------------------------

def init_params(key, state_dim, act_dim, n_blocks, h_dim, n_heads, max_timestep):
    D = h_dim // n_heads
    keys = iter(jax.random.split(key, 16 + 8 * n_blocks))

    def w(shape, scale=0.02):
        return scale * jax.random.normal(next(keys), shape, dtype=jnp.float32)

    def b(shape):
        return 0.01 * jax.random.normal(next(keys), shape, dtype=jnp.float32)

    params = {
        "embed_timestep": w((max_timestep, h_dim)),
        "embed_state_w": w((state_dim, h_dim)), "embed_state_b": b((1, h_dim)),
        "embed_action_w": w((act_dim, h_dim)), "embed_action_b": b((1, h_dim)),
        "embed_rtg_w": w((1, h_dim)), "embed_rtg_b": b((1, h_dim)),
        "embed_ln_g": jnp.ones((1, h_dim), jnp.float32),
        "embed_ln_b": jnp.zeros((1, h_dim), jnp.float32),
        # fused prediction heads: output columns = [rtg(1) | state | action]
        "predict_w": w((h_dim, 1 + state_dim + act_dim)),
        "predict_b": b((1, 1 + state_dim + act_dim)),
        "blocks": [],
    }
    for _ in range(n_blocks):
        blk = {
            # fused QKV weight (H, 3H), bf16 for the MXU; biases / LN stay f32
            "wqkv": w((h_dim, 3 * h_dim)).astype(jnp.bfloat16),
            "bqkv": b((1, 3 * h_dim)),
            # output projection stored head-major (n_heads, D, H)
            "wp": w((h_dim, h_dim)).reshape(n_heads, D, h_dim).astype(jnp.bfloat16),
            "bp": b((1, h_dim)),
            "ln1_g": jnp.ones((1, h_dim), jnp.float32),
            "ln1_b": jnp.zeros((1, h_dim), jnp.float32),
            "w1": w((h_dim, 4 * h_dim)).astype(jnp.bfloat16),
            "b1": b((1, 4 * h_dim)),
            "w2": w((4 * h_dim, h_dim)).astype(jnp.bfloat16),
            "b2": b((1, h_dim)),
            "ln2_g": jnp.ones((1, h_dim), jnp.float32),
            "ln2_b": jnp.zeros((1, h_dim), jnp.float32),
        }
        params["blocks"].append(blk)
    return params


# ----------------------------- forward pass ------------------------------------

def legged_transformer_forward(params, timesteps, states, actions, leg_length,
                               n_heads):
    B, T, state_dim = states.shape
    act_dim = actions.shape[-1]
    H = params["embed_timestep"].shape[1]
    S = 3 * T

    # TODO(synk): embed_timestep table lookup is an XLA gather (jnp.take); a Pallas
    # scalar-prefetch DMA gather is overkill at this scale.
    time_emb = jnp.take(params["embed_timestep"], timesteps, axis=0)      # (B,T,H)

    h = embed_tokens(states, actions, leg_length, time_emb, params)       # (B,T,3,H)
    h = h.reshape(B, S, H)     # free row-major reshape -> (s0, r0, a0, s1, r1, a1, ...)

    # causal mask hoisted out of the kernels: additive bias, computed once and
    # reused by every block pallas_call (constant index_map -> fetched once).
    idx = jnp.arange(S)
    mask_bias = jnp.where(idx[:, None] >= idx[None, :], 0.0,
                          MASK_VALUE).astype(jnp.float32)

    for blk in params["blocks"]:
        h = transformer_block(h, mask_bias, blk, n_heads)

    state_preds, action_preds, body_preds = prediction_heads(
        h, params, state_dim, act_dim)
    return state_preds, action_preds, body_preds


# ----------------------------- demo ---------------------------------------------

if __name__ == "__main__":
    B = 2
    context_len = 8
    state_dim, act_dim = 6, 3
    n_blocks, h_dim, n_heads = 2, 32, 2
    max_timestep = 64
    T = context_len

    key = jax.random.PRNGKey(0)
    kp, kt, ks, ka, kl = jax.random.split(key, 5)

    params = init_params(kp, state_dim, act_dim, n_blocks, h_dim, n_heads,
                         max_timestep)

    timesteps = jax.random.randint(kt, (B, T), 0, max_timestep, dtype=jnp.int32)
    states = jax.random.normal(ks, (B, T, state_dim), dtype=jnp.float32)
    actions = jax.random.normal(ka, (B, T, act_dim), dtype=jnp.float32)
    leg_length = jax.random.normal(kl, (B, T, 1), dtype=jnp.float32)

    state_preds, action_preds, body_preds = legged_transformer_forward(
        params, timesteps, states, actions, leg_length, n_heads)

    jax.block_until_ready((state_preds, action_preds, body_preds))
    assert state_preds.shape == (B, T, state_dim)
    assert action_preds.shape == (B, T, act_dim)
    assert body_preds.shape == (B, T, 1)
    assert bool(jnp.isfinite(state_preds).all())
    assert bool(jnp.isfinite(action_preds).all())
    assert bool(jnp.isfinite(body_preds).all())
    print("KERNEL_OK")
</pallas_src>

<mosaic_0001>
module attributes {stable_mosaic.version = 11 : i64} {
  func.func @_embed_kernel(%arg0: i32, %arg1: memref<1x8x6xf32, #tpu.memory_space<vmem>>, %arg2: memref<1x8x3xf32, #tpu.memory_space<vmem>>, %arg3: memref<1x8x1xf32, #tpu.memory_space<vmem>>, %arg4: memref<1x8x32xf32, #tpu.memory_space<vmem>>, %arg5: memref<6x32xf32, #tpu.memory_space<vmem>>, %arg6: memref<1x32xf32, #tpu.memory_space<vmem>>, %arg7: memref<3x32xf32, #tpu.memory_space<vmem>>, %arg8: memref<1x32xf32, #tpu.memory_space<vmem>>, %arg9: memref<1x32xf32, #tpu.memory_space<vmem>>, %arg10: memref<1x32xf32, #tpu.memory_space<vmem>>, %arg11: memref<1x32xf32, #tpu.memory_space<vmem>>, %arg12: memref<1x32xf32, #tpu.memory_space<vmem>>, %arg13: memref<1x8x3x32xf32, #tpu.memory_space<vmem>>) attributes {dimension_semantics = [#tpu.dimension_semantics<parallel>], iteration_bounds = array<i64: 2>, scalar_prefetch = 0 : i64, scratch_operands = 0 : i64, tpu.core_type = #tpu.core_type<tc>, window_params = [{transform_indices = @transform_0, window_bounds = array<i64: 1, 8, 6>}, {transform_indices = @transform_1, window_bounds = array<i64: 1, 8, 3>}, {transform_indices = @transform_2, window_bounds = array<i64: 1, 8, 1>}, {transform_indices = @transform_3, window_bounds = array<i64: 1, 8, 32>}, {pipeline_mode = #tpu.pipeline_mode<synchronous>, transform_indices = @transform_4, window_bounds = array<i64: 6, 32>}, {pipeline_mode = #tpu.pipeline_mode<synchronous>, transform_indices = @transform_5, window_bounds = array<i64: 1, 32>}, {pipeline_mode = #tpu.pipeline_mode<synchronous>, transform_indices = @transform_6, window_bounds = array<i64: 3, 32>}, {pipeline_mode = #tpu.pipeline_mode<synchronous>, transform_indices = @transform_7, window_bounds = array<i64: 1, 32>}, {pipeline_mode = #tpu.pipeline_mode<synchronous>, transform_indices = @transform_8, window_bounds = array<i64: 1, 32>}, {pipeline_mode = #tpu.pipeline_mode<synchronous>, transform_indices = @transform_9, window_bounds = array<i64: 1, 32>}, {pipeline_mode = #tpu.pipeline_mode<synchronous>, transform_indices = @transform_10, window_bounds = array<i64: 1, 32>}, {pipeline_mode = #tpu.pipeline_mode<synchronous>, transform_indices = @transform_11, window_bounds = array<i64: 1, 32>}, {transform_indices = @transform_12, window_bounds = array<i64: 1, 8, 3, 32>}]} {
    %c0 = arith.constant 0 : index
    %c0_0 = arith.constant 0 : index
    %c0_1 = arith.constant 0 : index
    %0 = vector.load %arg4[%c0, %c0_0, %c0_1] : memref<1x8x32xf32, #tpu.memory_space<vmem>>, vector<1x8x32xf32>
    %1 = vector.shape_cast %0 : vector<1x8x32xf32> to vector<8x32xf32>
    %c0_2 = arith.constant 0 : index
    %c0_3 = arith.constant 0 : index
    %c0_4 = arith.constant 0 : index
    %2 = vector.load %arg1[%c0_2, %c0_3, %c0_4] : memref<1x8x6xf32, #tpu.memory_space<vmem>>, vector<1x8x6xf32>
    %3 = vector.shape_cast %2 : vector<1x8x6xf32> to vector<8x6xf32>
    %c0_5 = arith.constant 0 : index
    %c0_6 = arith.constant 0 : index
    %4 = vector.load %arg5[%c0_5, %c0_6] : memref<6x32xf32, #tpu.memory_space<vmem>>, vector<6x32xf32>
    %cst = arith.constant dense<0.000000e+00> : vector<8x32xf32>
    %5 = tpu.matmul %3, %4, %cst {dimension_numbers = #tpu.dot_dimension_numbers<[1], [0], [0], [1], [0, 0, 1, 1], [], []>} : vector<8x6xf32>, vector<6x32xf32>, vector<8x32xf32> -> vector<8x32xf32>
    %c0_7 = arith.constant 0 : index
    %c0_8 = arith.constant 0 : index
    %6 = vector.load %arg6[%c0_7, %c0_8] : memref<1x32xf32, #tpu.memory_space<vmem>>, vector<1x32xf32>
    %7 = vector.broadcast %6 : vector<1x32xf32> to vector<8x32xf32>
    %8 = arith.addf %5, %7 : vector<8x32xf32>
    %9 = arith.addf %8, %1 : vector<8x32xf32>
    %c0_9 = arith.constant 0 : index
    %c0_10 = arith.constant 0 : index
    %c0_11 = arith.constant 0 : index
    %10 = vector.load %arg2[%c0_9, %c0_10, %c0_11] : memref<1x8x3xf32, #tpu.memory_space<vmem>>, vector<1x8x3xf32>
    %11 = vector.shape_cast %10 : vector<1x8x3xf32> to vector<8x3xf32>
    %c0_12 = arith.constant 0 : index
    %c0_13 = arith.constant 0 : index
    %12 = vector.load %arg7[%c0_12, %c0_13] : memref<3x32xf32, #tpu.memory_space<vmem>>, vector<3x32xf32>
    %cst_14 = arith.constant dense<0.000000e+00> : vector<8x32xf32>
    %13 = tpu.matmul %11, %12, %cst_14 {dimension_numbers = #tpu.dot_dimension_numbers<[1], [0], [0], [1], [0, 0, 1, 1], [], []>} : vector<8x3xf32>, vector<3x32xf32>, vector<8x32xf32> -> vector<8x32xf32>
    %c0_15 = arith.constant 0 : index
    %c0_16 = arith.constant 0 : index
    %14 = vector.load %arg8[%c0_15, %c0_16] : memref<1x32xf32, #tpu.memory_space<vmem>>, vector<1x32xf32>
    %15 = vector.broadcast %14 : vector<1x32xf32> to vector<8x32xf32>
    %16 = arith.addf %13, %15 : vector<8x32xf32>
    %17 = arith.addf %16, %1 : vector<8x32xf32>
    %c0_17 = arith.constant 0 : index
    %c0_18 = arith.constant 0 : index
    %c0_19 = arith.constant 0 : index
    %18 = vector.load %arg3[%c0_17, %c0_18, %c0_19] : memref<1x8x1xf32, #tpu.memory_space<vmem>>, vector<1x8x1xf32>
    %19 = vector.shape_cast %18 : vector<1x8x1xf32> to vector<8x1xf32>
    %c0_20 = arith.constant 0 : index
    %c0_21 = arith.constant 0 : index
    %20 = vector.load %arg9[%c0_20, %c0_21] : memref<1x32xf32, #tpu.memory_space<vmem>>, vector<1x32xf32>
    %21 = vector.broadcast %19 : vector<8x1xf32> to vector<8x32xf32>
    %22 = vector.broadcast %20 : vector<1x32xf32> to vector<8x32xf32>
    %23 = arith.mulf %21, %22 : vector<8x32xf32>
    %c0_22 = arith.constant 0 : index
    %c0_23 = arith.constant 0 : index
    %24 = vector.load %arg10[%c0_22, %c0_23] : memref<1x32xf32, #tpu.memory_space<vmem>>, vector<1x32xf32>
    %25 = vector.broadcast %24 : vector<1x32xf32> to vector<8x32xf32>
    %26 = arith.addf %23, %25 : vector<8x32xf32>
    %27 = arith.addf %26, %1 : vector<8x32xf32>
    %c0_24 = arith.constant 0 : index
    %c0_25 = arith.constant 0 : index
    %28 = vector.load %arg11[%c0_24, %c0_25] : memref<1x32xf32, #tpu.memory_space<vmem>>, vector<1x32xf32>
    %c0_26 = arith.constant 0 : index
    %c0_27 = arith.constant 0 : index
    %29 = vector.load %arg12[%c0_26, %c0_27] : memref<1x32xf32, #tpu.memory_space<vmem>>, vector<1x32xf32>
    %cst_28 = arith.constant dense<0.000000e+00> : vector<8xf32>
    %30 = vector.multi_reduction <add>, %9, %cst_28 [1] : vector<8x32xf32> to vector<8xf32>
    %31 = vector.shape_cast %30 : vector<8xf32> to vector<8x1xf32>
    %cst_29 = arith.constant 3.200000e+01 : f32
    %32 = vector.broadcast %cst_29 : f32 to vector<8x1xf32>
    %33 = arith.divf %31, %32 : vector<8x1xf32>
    %34 = vector.broadcast %33 : vector<8x1xf32> to vector<8x32xf32>
    %35 = arith.subf %9, %34 : vector<8x32xf32>
    %36 = arith.mulf %35, %35 : vector<8x32xf32>
    %cst_30 = arith.constant dense<0.000000e+00> : vector<8xf32>
    %37 = vector.multi_reduction <add>, %36, %cst_30 [1] : vector<8x32xf32> to vector<8xf32>
    %38 = vector.shape_cast %37 : vector<8xf32> to vector<8x1xf32>
    %cst_31 = arith.constant 3.200000e+01 : f32
    %39 = vector.broadcast %cst_31 : f32 to vector<8x1xf32>
    %40 = arith.divf %38, %39 : vector<8x1xf32>
    %41 = vector.broadcast %33 : vector<8x1xf32> to vector<8x32xf32>
    %42 = arith.subf %9, %41 : vector<8x32xf32>
    %cst_32 = arith.constant 9.99999974E-6 : f32
    %43 = vector.broadcast %cst_32 : f32 to vector<8x1xf32>
    %44 = arith.addf %40, %43 : vector<8x1xf32>
    %45 = math.rsqrt %44 : vector<8x1xf32>
    %46 = vector.broadcast %45 : vector<8x1xf32> to vector<8x32xf32>
    %47 = arith.mulf %42, %46 : vector<8x32xf32>
    %48 = vector.broadcast %28 : vector<1x32xf32> to vector<8x32xf32>
    %49 = arith.mulf %47, %48 : vector<8x32xf32>
    %50 = vector.broadcast %29 : vector<1x32xf32> to vector<8x32xf32>
    %51 = arith.addf %49, %50 : vector<8x32xf32>
    %cst_33 = arith.constant dense<0.000000e+00> : vector<8xf32>
    %52 = vector.multi_reduction <add>, %27, %cst_33 [1] : vector<8x32xf32> to vector<8xf32>
    %53 = vector.shape_cast %52 : vector<8xf32> to vector<8x1xf32>
    %cst_34 = arith.constant 3.200000e+01 : f32
    %54 = vector.broadcast %cst_34 : f32 to vector<8x1xf32>
    %55 = arith.divf %53, %54 : vector<8x1xf32>
    %56 = vector.broadcast %55 : vector<8x1xf32> to vector<8x32xf32>
    %57 = arith.subf %27, %56 : vector<8x32xf32>
    %58 = arith.mulf %57, %57 : vector<8x32xf32>
    %cst_35 = arith.constant dense<0.000000e+00> : vector<8xf32>
    %59 = vector.multi_reduction <add>, %58, %cst_35 [1] : vector<8x32xf32> to vector<8xf32>
    %60 = vector.shape_cast %59 : vector<8xf32> to vector<8x1xf32>
    %cst_36 = arith.constant 3.200000e+01 : f32
    %61 = vector.broadcast %cst_36 : f32 to vector<8x1xf32>
    %62 = arith.divf %60, %61 : vector<8x1xf32>
    %63 = vector.broadcast %55 : vector<8x1xf32> to vector<8x32xf32>
    %64 = arith.subf %27, %63 : vector<8x32xf32>
    %cst_37 = arith.constant 9.99999974E-6 : f32
    %65 = vector.broadcast %cst_37 : f32 to vector<8x1xf32>
    %66 = arith.addf %62, %65 : vector<8x1xf32>
    %67 = math.rsqrt %66 : vector<8x1xf32>
    %68 = vector.broadcast %67 : vector<8x1xf32> to vector<8x32xf32>
    %69 = arith.mulf %64, %68 : vector<8x32xf32>
    %70 = vector.broadcast %28 : vector<1x32xf32> to vector<8x32xf32>
    %71 = arith.mulf %69, %70 : vector<8x32xf32>
    %72 = vector.broadcast %29 : vector<1x32xf32> to vector<8x32xf32>
    %73 = arith.addf %71, %72 : vector<8x32xf32>
    %cst_38 = arith.constant dense<0.000000e+00> : vector<8xf32>
    %74 = vector.multi_reduction <add>, %17, %cst_38 [1] : vector<8x32xf32> to vector<8xf32>
    %75 = vector.shape_cast %74 : vector<8xf32> to vector<8x1xf32>
    %cst_39 = arith.constant 3.200000e+01 : f32
    %76 = vector.broadcast %cst_39 : f32 to vector<8x1xf32>
    %77 = arith.divf %75, %76 : vector<8x1xf32>
    %78 = vector.broadcast %77 : vector<8x1xf32> to vector<8x32xf32>
    %79 = arith.subf %17, %78 : vector<8x32xf32>
    %80 = arith.mulf %79, %79 : vector<8x32xf32>
    %cst_40 = arith.constant dense<0.000000e+00> : vector<8xf32>
    %81 = vector.multi_reduction <add>, %80, %cst_40 [1] : vector<8x32xf32> to vector<8xf32>
    %82 = vector.shape_cast %81 : vector<8xf32> to vector<8x1xf32>
    %cst_41 = arith.constant 3.200000e+01 : f32
    %83 = vector.broadcast %cst_41 : f32 to vector<8x1xf32>
    %84 = arith.divf %82, %83 : vector<8x1xf32>
    %85 = vector.broadcast %77 : vector<8x1xf32> to vector<8x32xf32>
    %86 = arith.subf %17, %85 : vector<8x32xf32>
    %cst_42 = arith.constant 9.99999974E-6 : f32
    %87 = vector.broadcast %cst_42 : f32 to vector<8x1xf32>
    %88 = arith.addf %84, %87 : vector<8x1xf32>
    %89 = math.rsqrt %88 : vector<8x1xf32>
    %90 = vector.broadcast %89 : vector<8x1xf32> to vector<8x32xf32>
    %91 = arith.mulf %86, %90 : vector<8x32xf32>
    %92 = vector.broadcast %28 : vector<1x32xf32> to vector<8x32xf32>
    %93 = arith.mulf %91, %92 : vector<8x32xf32>
    %94 = vector.broadcast %29 : vector<1x32xf32> to vector<8x32xf32>
    %95 = arith.addf %93, %94 : vector<8x32xf32>
    %96 = vector.shape_cast %51 : vector<8x32xf32> to vector<8x1x32xf32>
    %97 = vector.shape_cast %73 : vector<8x32xf32> to vector<8x1x32xf32>
    %98 = vector.shape_cast %95 : vector<8x32xf32> to vector<8x1x32xf32>
    %99 = tpu.concatenate %96, %97, %98 in 1 : vector<8x1x32xf32>, vector<8x1x32xf32>, vector<8x1x32xf32> -> vector<8x3x32xf32>
    %c0_43 = arith.constant 0 : index
    %c0_44 = arith.constant 0 : index
    %c0_45 = arith.constant 0 : index
    %c0_46 = arith.constant 0 : index
    %100 = vector.load %arg13[%c0_43, %c0_44, %c0_45, %c0_46] : memref<1x8x3x32xf32, #tpu.memory_space<vmem>>, vector<1x8x3x32xf32>
    %101 = vector.shape_cast %100 : vector<1x8x3x32xf32> to vector<8x3x32xf32>
    %102 = vector.shape_cast %99 : vector<8x3x32xf32> to vector<1x8x3x32xf32>
    tpu.vector_store %arg13[%c0_43, %c0_44, %c0_45, %c0_46], %102 {strides = array<i32>} : memref<1x8x3x32xf32, #tpu.memory_space<vmem>>, vector<1x8x3x32xf32>,
    return
  }
  func.func @transform_0(%arg0: i32) -> (i32, i32, i32) {
    %c0_i32 = arith.constant 0 : i32
    %c0_i32_0 = arith.constant 0 : i32
    %c0_i32_1 = arith.constant 0 : i32
    return %arg0, %c0_i32, %c0_i32_0 : i32, i32, i32
  }
  func.func @transform_1(%arg0: i32) -> (i32, i32, i32) {
    %c0_i32 = arith.constant 0 : i32
    %c0_i32_0 = arith.constant 0 : i32
    %c0_i32_1 = arith.constant 0 : i32
    return %arg0, %c0_i32, %c0_i32_0 : i32, i32, i32
  }
  func.func @transform_2(%arg0: i32) -> (i32, i32, i32) {
    %c0_i32 = arith.constant 0 : i32
    %c0_i32_0 = arith.constant 0 : i32
    %c0_i32_1 = arith.constant 0 : i32
    return %arg0, %c0_i32, %c0_i32_0 : i32, i32, i32
  }
  func.func @transform_3(%arg0: i32) -> (i32, i32, i32) {
    %c0_i32 = arith.constant 0 : i32
    %c0_i32_0 = arith.constant 0 : i32
    %c0_i32_1 = arith.constant 0 : i32
    return %arg0, %c0_i32, %c0_i32_0 : i32, i32, i32
  }
  func.func @transform_4(%arg0: i32) -> (i32, i32) {
    %c0_i32 = arith.constant 0 : i32
    %c0_i32_0 = arith.constant 0 : i32
    %c0_i32_1 = arith.constant 0 : i32
    return %c0_i32, %c0_i32_0 : i32, i32
  }
  func.func @transform_5(%arg0: i32) -> (i32, i32) {
    %c0_i32 = arith.constant 0 : i32
    %c0_i32_0 = arith.constant 0 : i32
    %c0_i32_1 = arith.constant 0 : i32
    return %c0_i32, %c0_i32_0 : i32, i32
  }
  func.func @transform_6(%arg0: i32) -> (i32, i32) {
    %c0_i32 = arith.constant 0 : i32
    %c0_i32_0 = arith.constant 0 : i32
    %c0_i32_1 = arith.constant 0 : i32
    return %c0_i32, %c0_i32_0 : i32, i32
  }
  func.func @transform_7(%arg0: i32) -> (i32, i32) {
    %c0_i32 = arith.constant 0 : i32
    %c0_i32_0 = arith.constant 0 : i32
    %c0_i32_1 = arith.constant 0 : i32
    return %c0_i32, %c0_i32_0 : i32, i32
  }
  func.func @transform_8(%arg0: i32) -> (i32, i32) {
    %c0_i32 = arith.constant 0 : i32
    %c0_i32_0 = arith.constant 0 : i32
    %c0_i32_1 = arith.constant 0 : i32
    return %c0_i32, %c0_i32_0 : i32, i32
  }
  func.func @transform_9(%arg0: i32) -> (i32, i32) {
    %c0_i32 = arith.constant 0 : i32
    %c0_i32_0 = arith.constant 0 : i32
    %c0_i32_1 = arith.constant 0 : i32
    return %c0_i32, %c0_i32_0 : i32, i32
  }
  func.func @transform_10(%arg0: i32) -> (i32, i32) {
    %c0_i32 = arith.constant 0 : i32
    %c0_i32_0 = arith.constant 0 : i32
    %c0_i32_1 = arith.constant 0 : i32
    return %c0_i32, %c0_i32_0 : i32, i32
  }
  func.func @transform_11(%arg0: i32) -> (i32, i32) {
    %c0_i32 = arith.constant 0 : i32
    %c0_i32_0 = arith.constant 0 : i32
    %c0_i32_1 = arith.constant 0 : i32
    return %c0_i32, %c0_i32_0 : i32, i32
  }
  func.func @transform_12(%arg0: i32) -> (i32, i32, i32, i32) {
    %c0_i32 = arith.constant 0 : i32
    %c0_i32_0 = arith.constant 0 : i32
    %c0_i32_1 = arith.constant 0 : i32
    %c0_i32_2 = arith.constant 0 : i32
    return %arg0, %c0_i32, %c0_i32_0, %c0_i32_1 : i32, i32, i32, i32
  }
}

</mosaic_0001>

<llo_original>
// kernel: tpu_custom_call.1
$region0: #{tpu_custom_call.1}
  #allocation0 [shape = 'u32[]', space=smem, size = 0x4, offset = 0x4, fixed_abs, tag = 'smem constant byte address 0x4 - core index']
  #allocation1 [shape = 'u32[144,128]{1,0:T(1,128)}', space=vmem, size = 0x12000, scoped, tag = 'internal scratch']
  %s0 = inlined_call_operand.vmem [shape: f32[2,8,6], index: 0, kind: input, shape index: {}]
  %s1 = inlined_call_operand.vmem [shape: f32[2,8,3], index: 1, kind: input, shape index: {}]
  %s2 = inlined_call_operand.vmem [shape: f32[2,8,1], index: 2, kind: input, shape index: {}]
  %s3 = inlined_call_operand.vmem [shape: f32[2,8,32], index: 3, kind: input, shape index: {}]
  %s4 = inlined_call_operand.vmem [shape: f32[6,32], index: 4, kind: input, shape index: {}]
  %s5 = inlined_call_operand.vmem [shape: f32[1,32], index: 5, kind: input, shape index: {}]
  %s6 = inlined_call_operand.vmem [shape: f32[3,32], index: 6, kind: input, shape index: {}]
  %s7 = inlined_call_operand.vmem [shape: f32[1,32], index: 7, kind: input, shape index: {}]
  %s8 = inlined_call_operand.vmem [shape: f32[1,32], index: 8, kind: input, shape index: {}]
  %s9 = inlined_call_operand.vmem [shape: f32[1,32], index: 9, kind: input, shape index: {}]
  %s10 = inlined_call_operand.vmem [shape: f32[1,32], index: 10, kind: input, shape index: {}]
  %s11 = inlined_call_operand.vmem [shape: f32[1,32], index: 11, kind: input, shape index: {}]
  %s12 = inlined_call_operand.vmem [shape: f32[2,8,3,32], index: 12, kind: output, shape index: {}]
  %s13 = sld [smem:[#allocation0]]
  $region81: #{tpu_custom_call.1} parent=0
    _
  %s15 = ssub.s32 1, %s13
  %s16 = scalar_select 0, %s15, %s13
  loop: start=0, step=1, limit=4
  $region2: #{tpu_custom_call.1} parent=0 // loop_pre_header
    _
  $region3: #{tpu_custom_call.1} parent=0 // loop_header
    %s18 = sphi 0, %s22
    %p19 = scmp.ge.s32.totalorder %s18, 4
    %s28 = sphi 0, %s30
    %s31 = sphi 0, %s28
    %s32 = sphi 0, %s31
    %s48 = sphi 0, %s32
    %s54 = sphi 0, %s56
    %s57 = sphi 0, %s54
    %s58 = sphi 0, %s57
    %s74 = sphi 0, %s58
    %s80 = sphi 0, %s82
    %s83 = sphi 0, %s80
    %s84 = sphi 0, %s83
    %s100 = sphi 0, %s84
    %s106 = sphi 0, %s108
    %s109 = sphi 0, %s106
    %s110 = sphi 0, %s109
    %s126 = sphi 0, %s110
    %s130 = sphi 0, %s130
    %s132 = sphi 0, %s130
    %s133 = sphi 0, %s132
    %s147 = sphi 0, %s133
    %s151 = sphi 0, %s151
    %s153 = sphi 0, %s151
    %s154 = sphi 0, %s153
    %s168 = sphi 0, %s154
    %s172 = sphi 0, %s172
    %s174 = sphi 0, %s172
    %s175 = sphi 0, %s174
    %s189 = sphi 0, %s175
    %s193 = sphi 0, %s193
    %s195 = sphi 0, %s193
    %s196 = sphi 0, %s195
    %s210 = sphi 0, %s196
    %s214 = sphi 0, %s214
    %s216 = sphi 0, %s214
    %s217 = sphi 0, %s216
    %s231 = sphi 0, %s217
    %s235 = sphi 0, %s235
    %s237 = sphi 0, %s235
    %s238 = sphi 0, %s237
    %s252 = sphi 0, %s238
    %s256 = sphi 0, %s256
    %s258 = sphi 0, %s256
    %s259 = sphi 0, %s258
    %s273 = sphi 0, %s259
    %s277 = sphi 0, %s277
    %s279 = sphi 0, %s277
    %s280 = sphi 0, %s279
    %s294 = sphi 0, %s280
    %s300 = sphi 0, %s302
    %s303 = sphi 0, %s300
    %s304 = sphi 0, %s303
    %s320 = sphi 0, %s304
  $region4: #{tpu_custom_call.1} parent=0 // loop_header_branch
    %21 = sbr.rel (%p19) target = $region8
  $region5: #{tpu_custom_call.1} parent=0 // loop_body
    %s23 = ssub.s32 %s18, 1
    %s24 = ssub.s32 %s18, 2
    %s25 = sadd.s32 %s18, 1
    %s26 = ssub.s32 %s18, %s25
    %p27 = scmp.eq.s32.totalorder %s26, 0
    %s29 = sadd.s32 %s28, 1
    %s30 = scalar_select %p27, %s28, %s29
    %p33 = pneg %p27
    %p34 = scmp.eq.s32.totalorder %s18, 1
    %p35 = por %p33, %p34
    %p36 = scmp.ne.s32.totalorder %s28, %s31
    %p37 = scmp.eq.s32.totalorder %s18, 0
    %p38 = por %p36, %p37
    %p39 = scmp.ne.s32.totalorder %s28, %s31
    %p40 = scmp.eq.s32.totalorder %s23, 1
    %p41 = por %p39, %p40
    %p42 = scmp.ne.s32.totalorder %s31, %s32
    %p43 = scmp.eq.s32.totalorder %s23, 0
    %p44 = por %p42, %p43
    %p45 = scmp.ne.s32.totalorder %s31, %s32
    %p46 = scmp.eq.s32.totalorder %s24, 1
    %p47 = por %p45, %p46
    %p49 = scmp.ne.s32.totalorder %s32, %s48
    %p50 = scmp.eq.s32.totalorder %s24, 0
    %p51 = por %p49, %p50
    %s52 = ssub.s32 %s18, %s25
    %p53 = scmp.eq.s32.totalorder %s52, 0
    %s55 = sadd.s32 %s54, 1
    %s56 = scalar_select %p53, %s54, %s55
    %p59 = pneg %p53
    %p60 = scmp.eq.s32.totalorder %s18, 1
    %p61 = por %p59, %p60
    %p62 = scmp.ne.s32.totalorder %s54, %s57
    %p63 = scmp.eq.s32.totalorder %s18, 0
    %p64 = por %p62, %p63
    %p65 = scmp.ne.s32.totalorder %s54, %s57
    %p66 = scmp.eq.s32.totalorder %s23, 1
    %p67 = por %p65, %p66
    %p68 = scmp.ne.s32.totalorder %s57, %s58
    %p69 = scmp.eq.s32.totalorder %s23, 0
    %p70 = por %p68, %p69
    %p71 = scmp.ne.s32.totalorder %s57, %s58
    %p72 = scmp.eq.s32.totalorder %s24, 1
    %p73 = por %p71, %p72
    %p75 = scmp.ne.s32.totalorder %s58, %s74
    %p76 = scmp.eq.s32.totalorder %s24, 0
    %p77 = por %p75, %p76
    %s78 = ssub.s32 %s18, %s25
    %p79 = scmp.eq.s32.totalorder %s78, 0
    %s81 = sadd.s32 %s80, 1
    %s82 = scalar_select %p79, %s80, %s81
    %p85 = pneg %p79
    %p86 = scmp.eq.s32.totalorder %s18, 1
    %p87 = por %p85, %p86
    %p88 = scmp.ne.s32.totalorder %s80, %s83
    %p89 = scmp.eq.s32.totalorder %s18, 0
    %p90 = por %p88, %p89
    %p91 = scmp.ne.s32.totalorder %s80, %s83
    %p92 = scmp.eq.s32.totalorder %s23, 1
    %p93 = por %p91, %p92
    %p94 = scmp.ne.s32.totalorder %s83, %s84
    %p95 = scmp.eq.s32.totalorder %s23, 0
    %p96 = por %p94, %p95
    %p97 = scmp.ne.s32.totalorder %s83, %s84
    %p98 = scmp.eq.s32.totalorder %s24, 1
    %p99 = por %p97, %p98
    %p101 = scmp.ne.s32.totalorder %s84, %s100
    %p102 = scmp.eq.s32.totalorder %s24, 0
    %p103 = por %p101, %p102
    %s104 = ssub.s32 %s18, %s25
    %p105 = scmp.eq.s32.totalorder %s104, 0
    %s107 = sadd.s32 %s106, 1
    %s108 = scalar_select %p105, %s106, %s107
    %p111 = pneg %p105
    %p112 = scmp.eq.s32.totalorder %s18, 1
    %p113 = por %p111, %p112
    %p114 = scmp.ne.s32.totalorder %s106, %s109
    %p115 = scmp.eq.s32.totalorder %s18, 0
    %p116 = por %p114, %p115
    %p117 = scmp.ne.s32.totalorder %s106, %s109
    %p118 = scmp.eq.s32.totalorder %s23, 1
    %p119 = por %p117, %p118
    %p120 = scmp.ne.s32.totalorder %s109, %s110
    %p121 = scmp.eq.s32.totalorder %s23, 0
    %p122 = por %p120, %p121
    %p123 = scmp.ne.s32.totalorder %s109, %s110
    %p124 = scmp.eq.s32.totalorder %s24, 1
    %p125 = por %p123, %p124
    %p127 = scmp.ne.s32.totalorder %s110, %s126
    %p128 = scmp.eq.s32.totalorder %s24, 0
    %p129 = por %p127, %p128
    %s131 = sadd.s32 %s130, 1
    %p134 = scmp.eq.s32.totalorder %s18, 1
    %p135 = scmp.ne.s32.totalorder %s130, %s132
    %p136 = scmp.eq.s32.totalorder %s18, 0
    %p137 = por %p135, %p136
    %p138 = scmp.ne.s32.totalorder %s130, %s132
    %p139 = scmp.eq.s32.totalorder %s23, 1
    %p140 = por %p138, %p139
    %p141 = scmp.ne.s32.totalorder %s132, %s133
    %p142 = scmp.eq.s32.totalorder %s23, 0
    %p143 = por %p141, %p142
    %p144 = scmp.ne.s32.totalorder %s132, %s133
    %p145 = scmp.eq.s32.totalorder %s24, 1
    %p146 = por %p144, %p145
    %p148 = scmp.ne.s32.totalorder %s133, %s147
    %p149 = scmp.eq.s32.totalorder %s24, 0
    %p150 = por %p148, %p149
    %s152 = sadd.s32 %s151, 1
    %p155 = scmp.eq.s32.totalorder %s18, 1
    %p156 = scmp.ne.s32.totalorder %s151, %s153
    %p157 = scmp.eq.s32.totalorder %s18, 0
    %p158 = por %p156, %p157
    %p159 = scmp.ne.s32.totalorder %s151, %s153
    %p160 = scmp.eq.s32.totalorder %s23, 1
    %p161 = por %p159, %p160
    %p162 = scmp.ne.s32.totalorder %s153, %s154
    %p163 = scmp.eq.s32.totalorder %s23, 0
    %p164 = por %p162, %p163
    %p165 = scmp.ne.s32.totalorder %s153, %s154
    %p166 = scmp.eq.s32.totalorder %s24, 1
    %p167 = por %p165, %p166
    %p169 = scmp.ne.s32.totalorder %s154, %s168
    %p170 = scmp.eq.s32.totalorder %s24, 0
    %p171 = por %p169, %p170
    %s173 = sadd.s32 %s172, 1
    %p176 = scmp.eq.s32.totalorder %s18, 1
    %p177 = scmp.ne.s32.totalorder %s172, %s174
    %p178 = scmp.eq.s32.totalorder %s18, 0
    %p179 = por %p177, %p178
    %p180 = scmp.ne.s32.totalorder %s172, %s174
    %p181 = scmp.eq.s32.totalorder %s23, 1
    %p182 = por %p180, %p181
    %p183 = scmp.ne.s32.totalorder %s174, %s175
    %p184 = scmp.eq.s32.totalorder %s23, 0
    %p185 = por %p183, %p184
    %p186 = scmp.ne.s32.totalorder %s174, %s175
    %p187 = scmp.eq.s32.totalorder %s24, 1
    %p188 = por %p186, %p187
    %p190 = scmp.ne.s32.totalorder %s175, %s189
    %p191 = scmp.eq.s32.totalorder %s24, 0
    %p192 = por %p190, %p191
    %s194 = sadd.s32 %s193, 1
    %p197 = scmp.eq.s32.totalorder %s18, 1
    %p198 = scmp.ne.s32.totalorder %s193, %s195
    %p199 = scmp.eq.s32.totalorder %s18, 0
    %p200 = por %p198, %p199
    %p201 = scmp.ne.s32.totalorder %s193, %s195
    %p202 = scmp.eq.s32.totalorder %s23, 1
    %p203 = por %p201, %p202
    %p204 = scmp.ne.s32.totalorder %s195, %s196
    %p205 = scmp.eq.s32.totalorder %s23, 0
    %p206 = por %p204, %p205
    %p207 = scmp.ne.s32.totalorder %s195, %s196
    %p208 = scmp.eq.s32.totalorder %s24, 1
    %p209 = por %p207, %p208
    %p211 = scmp.ne.s32.totalorder %s196, %s210
    %p212 = scmp.eq.s32.totalorder %s24, 0
    %p213 = por %p211, %p212
    %s215 = sadd.s32 %s214, 1
    %p218 = scmp.eq.s32.totalorder %s18, 1
    %p219 = scmp.ne.s32.totalorder %s214, %s216
    %p220 = scmp.eq.s32.totalorder %s18, 0
    %p221 = por %p219, %p220
    %p222 = scmp.ne.s32.totalorder %s214, %s216
    %p223 = scmp.eq.s32.totalorder %s23, 1
    %p224 = por %p222, %p223
    %p225 = scmp.ne.s32.totalorder %s216, %s217
    %p226 = scmp.eq.s32.totalorder %s23, 0
    %p227 = por %p225, %p226
    %p228 = scmp.ne.s32.totalorder %s216, %s217
    %p229 = scmp.eq.s32.totalorder %s24, 1
    %p230 = por %p228, %p229
    %p232 = scmp.ne.s32.totalorder %s217, %s231
    %p233 = scmp.eq.s32.totalorder %s24, 0
    %p234 = por %p232, %p233
    %s236 = sadd.s32 %s235, 1
    %p239 = scmp.eq.s32.totalorder %s18, 1
    %p240 = scmp.ne.s32.totalorder %s235, %s237
    %p241 = scmp.eq.s32.totalorder %s18, 0
    %p242 = por %p240, %p241
    %p243 = scmp.ne.s32.totalorder %s235, %s237
    %p244 = scmp.eq.s32.totalorder %s23, 1
    %p245 = por %p243, %p244
    %p246 = scmp.ne.s32.totalorder %s237, %s238
    %p247 = scmp.eq.s32.totalorder %s23, 0
    %p248 = por %p246, %p247
    %p249 = scmp.ne.s32.totalorder %s237, %s238
    %p250 = scmp.eq.s32.totalorder %s24, 1
    %p251 = por %p249, %p250
    %p253 = scmp.ne.s32.totalorder %s238, %s252
    %p254 = scmp.eq.s32.totalorder %s24, 0
    %p255 = por %p253, %p254
    %s257 = sadd.s32 %s256, 1
    %p260 = scmp.eq.s32.totalorder %s18, 1
    %p261 = scmp.ne.s32.totalorder %s256, %s258
    %p262 = scmp.eq.s32.totalorder %s18, 0
    %p263 = por %p261, %p262
    %p264 = scmp.ne.s32.totalorder %s256, %s258
    %p265 = scmp.eq.s32.totalorder %s23, 1
    %p266 = por %p264, %p265
    %p267 = scmp.ne.s32.totalorder %s258, %s259
    %p268 = scmp.eq.s32.totalorder %s23, 0
    %p269 = por %p267, %p268
    %p270 = scmp.ne.s32.totalorder %s258, %s259
    %p271 = scmp.eq.s32.totalorder %s24, 1
    %p272 = por %p270, %p271
    %p274 = scmp.ne.s32.totalorder %s259, %s273
    %p275 = scmp.eq.s32.totalorder %s24, 0
    %p276 = por %p274, %p275
    %s278 = sadd.s32 %s277, 1
    %p281 = scmp.eq.s32.totalorder %s18, 1
    %p282 = scmp.ne.s32.totalorder %s277, %s279
    %p283 = scmp.eq.s32.totalorder %s18, 0
    %p284 = por %p282, %p283
    %p285 = scmp.ne.s32.totalorder %s277, %s279
    %p286 = scmp.eq.s32.totalorder %s23, 1
    %p287 = por %p285, %p286
    %p288 = scmp.ne.s32.totalorder %s279, %s280
    %p289 = scmp.eq.s32.totalorder %s23, 0
    %p290 = por %p288, %p289
    %p291 = scmp.ne.s32.totalorder %s279, %s280
    %p292 = scmp.eq.s32.totalorder %s24, 1
    %p293 = por %p291, %p292
    %p295 = scmp.ne.s32.totalorder %s280, %s294
    %p296 = scmp.eq.s32.totalorder %s24, 0
    %p297 = por %p295, %p296
    %s298 = ssub.s32 %s18, %s25
    %p299 = scmp.eq.s32.totalorder %s298, 0
    %s301 = sadd.s32 %s300, 1
    %s302 = scalar_select %p299, %s300, %s301
    %p305 = pneg %p299
    %p306 = scmp.eq.s32.totalorder %s18, 1
    %p307 = por %p305, %p306
    %p308 = scmp.ne.s32.totalorder %s300, %s303
    %p309 = scmp.eq.s32.totalorder %s18, 0
    %p310 = por %p308, %p309
    %p311 = scmp.ne.s32.totalorder %s300, %s303
    %p312 = scmp.eq.s32.totalorder %s23, 1
    %p313 = por %p311, %p312
    %p314 = scmp.ne.s32.totalorder %s303, %s304
    %p315 = scmp.eq.s32.totalorder %s23, 0
    %p316 = por %p314, %p315
    %p317 = scmp.ne.s32.totalorder %s303, %s304
    %p318 = scmp.eq.s32.totalorder %s24, 1
    %p319 = por %p317, %p318
    %p321 = scmp.ne.s32.totalorder %s304, %s320
    %p322 = scmp.eq.s32.totalorder %s24, 0
    %p323 = por %p321, %p322
    %p324 = scmp.le.s32.totalorder 1, %s18
    %p325 = scmp.lt.s32.totalorder %s18, 3
    %p326 = pnand %p324, %p325
    %p327 = pneg %p326
    // Predicated region
    $region9: #{tpu_custom_call.1} parent=5 // pred_check
      _
    $region10: #{tpu_custom_call.1} parent=5 // pred_check_branch
      %329 = sbr.rel (%p326) target = $region12
    $region11: #{tpu_custom_call.1} parent=5 // pred_region
      %s330 = ssub.s32 %s18, 1
      // Predicated region
      $region13: #{tpu_custom_call.1} parent=11 // pred_check
        %p331 = pneg %p143
      $region14: #{tpu_custom_call.1} parent=11 // pred_check_branch
        %333 = sbr.rel (%p331) target = $region16
      $region15: #{tpu_custom_call.1} parent=11 // pred_region
        _
      $region16: #{tpu_custom_call.1} parent=11 // pred_fallthru
        _
      // Predicated region
      $region17: #{tpu_custom_call.1} parent=11 // pred_check
        %p334 = pneg %p164
      $region18: #{tpu_custom_call.1} parent=11 // pred_check_branch
        %336 = sbr.rel (%p334) target = $region20
      $region19: #{tpu_custom_call.1} parent=11 // pred_region
        _
      $region20: #{tpu_custom_call.1} parent=11 // pred_fallthru
        _
      // Predicated region
      $region21: #{tpu_custom_call.1} parent=11 // pred_check
        %p337 = pneg %p185
      $region22: #{tpu_custom_call.1} parent=11 // pred_check_branch
        %339 = sbr.rel (%p337) target = $region24
      $region23: #{tpu_custom_call.1} parent=11 // pred_region
        _
      $region24: #{tpu_custom_call.1} parent=11 // pred_fallthru
        _
      // Predicated region
      $region25: #{tpu_custom_call.1} parent=11 // pred_check
        %p340 = pneg %p206
      $region26: #{tpu_custom_call.1} parent=11 // pred_check_branch
        %342 = sbr.rel (%p340) target = $region28
      $region27: #{tpu_custom_call.1} parent=11 // pred_region
        _
      $region28: #{tpu_custom_call.1} parent=11 // pred_fallthru
        _
      // Predicated region
      $region29: #{tpu_custom_call.1} parent=11 // pred_check
        %p343 = pneg %p227
      $region30: #{tpu_custom_call.1} parent=11 // pred_check_branch
        %345 = sbr.rel (%p343) target = $region32
      $region31: #{tpu_custom_call.1} parent=11 // pred_region
        _
      $region32: #{tpu_custom_call.1} parent=11 // pred_fallthru
        _
      // Predicated region
      $region33: #{tpu_custom_call.1} parent=11 // pred_check
        %p346 = pneg %p248
      $region34: #{tpu_custom_call.1} parent=11 // pred_check_branch
        %348 = sbr.rel (%p346) target = $region36
      $region35: #{tpu_custom_call.1} parent=11 // pred_region
        _
      $region36: #{tpu_custom_call.1} parent=11 // pred_fallthru
        _
      // Predicated region
      $region37: #{tpu_custom_call.1} parent=11 // pred_check
        %p349 = pneg %p269
      $region38: #{tpu_custom_call.1} parent=11 // pred_check_branch
        %351 = sbr.rel (%p349) target = $region40
      $region39: #{tpu_custom_call.1} parent=11 // pred_region
        _
      $region40: #{tpu_custom_call.1} parent=11 // pred_fallthru
        _
      // Predicated region
      $region41: #{tpu_custom_call.1} parent=11 // pred_check
        %p352 = pneg %p290
      $region42: #{tpu_custom_call.1} parent=11 // pred_check_branch
        %354 = sbr.rel (%p352) target = $region44
      $region43: #{tpu_custom_call.1} parent=11 // pred_region
        _
      $region44: #{tpu_custom_call.1} parent=11 // pred_fallthru
        _
    $region12: #{tpu_custom_call.1} parent=5 // pred_fallthru
      _
    %p355 = scmp.lt.s32.totalorder %s18, 2
    // Predicated region
    $region45: #{tpu_custom_call.1} parent=5 // pred_check
      %p356 = pneg %p355
    $region46: #{tpu_custom_call.1} parent=5 // pred_check_branch
      %358 = sbr.rel (%p356) target = $region48
    $region47: #{tpu_custom_call.1} parent=5 // pred_region
      // Predicated region
      $region49: #{tpu_custom_call.1} parent=47 // pred_check
        %p359 = pneg %p38
      $region50: #{tpu_custom_call.1} parent=47 // pred_check_branch
        %361 = sbr.rel (%p359) target = $region52
      $region51: #{tpu_custom_call.1} parent=47 // pred_region
        %p362 = scmp.lt.s32.totalorder %s18, 1
        %s363 = scalar_select %p362, %s18, 1
        %s364 = smul.addr %s363, 8
        %s365 = scalar_lea.vmem %s0, %s364
      $region52: #{tpu_custom_call.1} parent=47 // pred_fallthru
        _
      // Predicated region
      $region53: #{tpu_custom_call.1} parent=47 // pred_check
        %p366 = pneg %p64
      $region54: #{tpu_custom_call.1} parent=47 // pred_check_branch
        %368 = sbr.rel (%p366) target = $region56
      $region55: #{tpu_custom_call.1} parent=47 // pred_region
        %p369 = scmp.lt.s32.totalorder %s18, 1
        %s370 = scalar_select %p369, %s18, 1
        %s371 = smul.addr %s370, 8
        %s372 = scalar_lea.vmem %s1, %s371
      $region56: #{tpu_custom_call.1} parent=47 // pred_fallthru
        _
      // Predicated region
      $region57: #{tpu_custom_call.1} parent=47 // pred_check
        %p373 = pneg %p90
      $region58: #{tpu_custom_call.1} parent=47 // pred_check_branch
        %375 = sbr.rel (%p373) target = $region60
      $region59: #{tpu_custom_call.1} parent=47 // pred_region
        %p376 = scmp.lt.s32.totalorder %s18, 1
        %s377 = scalar_select %p376, %s18, 1
        %s378 = smul.addr %s377, 8
        %s379 = scalar_lea.vmem %s2, %s378
      $region60: #{tpu_custom_call.1} parent=47 // pred_fallthru
        _
      // Predicated region
      $region61: #{tpu_custom_call.1} parent=47 // pred_check
        %p380 = pneg %p116
      $region62: #{tpu_custom_call.1} parent=47 // pred_check_branch
        %382 = sbr.rel (%p380) target = $region64
      $region63: #{tpu_custom_call.1} parent=47 // pred_region
        %p383 = scmp.lt.s32.totalorder %s18, 1
        %s384 = scalar_select %p383, %s18, 1
        %s385 = smul.addr %s384, 8
        %s386 = scalar_lea.vmem %s3, %s385
      $region64: #{tpu_custom_call.1} parent=47 // pred_fallthru
        _
    $region48: #{tpu_custom_call.1} parent=5 // pred_fallthru
      _
    %p387 = scmp.le.s32.totalorder 1, %s18
    %p388 = scmp.lt.s32.totalorder %s18, 3
    %p389 = pnand %p387, %p388
    %p390 = pneg %p389
    // Predicated region
    $region65: #{tpu_custom_call.1} parent=5 // pred_check
      _
    $region66: #{tpu_custom_call.1} parent=5 // pred_check_branch
      %392 = sbr.rel (%p389) target = $region68
    $region67: #{tpu_custom_call.1} parent=5 // pred_region
      %s393 = ssub.s32 %s18, 1
      %p394 = scmp.lt.s32.totalorder %s23, 1
      %s395 = scalar_select %p394, %s23, 1
      %s396 = smul.addr %s395, 8
      %s397 = scalar_lea.vmem %s0, %s396
      %p398 = pneg %p44
      %p399 = pneg %p41
      %p400 = scmp.lt.s32.totalorder %s23, 1
      %s401 = scalar_select %p400, %s23, 1
      %s402 = smul.addr %s401, 8
      %s403 = scalar_lea.vmem %s1, %s402
      %p404 = pneg %p70
      %p405 = pneg %p67
      %p406 = scmp.lt.s32.totalorder %s23, 1
      %s407 = scalar_select %p406, %s23, 1
      %s408 = smul.addr %s407, 8
      %s409 = scalar_lea.vmem %s2, %s408
      %p410 = pneg %p96
      %p411 = pneg %p93
      %p412 = scmp.lt.s32.totalorder %s23, 1
      %s413 = scalar_select %p412, %s23, 1
      %s414 = smul.addr %s413, 8
      %s415 = scalar_lea.vmem %s3, %s414
      %p416 = pneg %p122
      %p417 = pneg %p119
      %p418 = pneg %p143
      %p419 = pneg %p140
      %p420 = pneg %p164
      %p421 = pneg %p161
      %p422 = pneg %p185
      %p423 = pneg %p182
      %p424 = pneg %p206
      %p425 = pneg %p203
      %p426 = pneg %p227
      %p427 = pneg %p224
      %p428 = pneg %p248
      %p429 = pneg %p245
      %p430 = pneg %p269
      %p431 = pneg %p266
      %p432 = pneg %p290
      %p433 = pneg %p287
      %p434 = pneg %p316
      %p435 = pneg %p313
      %p436 = scmp.lt.s32.totalorder %s23, 1
      %s437 = scalar_select %p436, %s23, 1
      %s438 = smul.addr %s437, 8
      %s439 = smul.addr %s438, 4
      %s440 = scalar_lea.vmem %s12, %s439
      %p441 = scmp.lt.s32.totalorder %s23, 1
      %s442 = scalar_select %p441, %s23, 1
      %s443 = smul.addr %s442, 8
      %s444 = scalar_lea.vmem %s0, %s443
      %p445 = scmp.lt.s32.totalorder %s23, 1
      %s446 = scalar_select %p445, %s23, 1
      %s447 = smul.addr %s446, 8
      %s448 = scalar_lea.vmem %s1, %s447
      %p449 = scmp.lt.s32.totalorder %s23, 1
      %s450 = scalar_select %p449, %s23, 1
      %s451 = smul.addr %s450, 8
      %s452 = scalar_lea.vmem %s2, %s451
      %p453 = scmp.lt.s32.totalorder %s23, 1
      %s454 = scalar_select %p453, %s23, 1
      %s455 = smul.addr %s454, 8
      %s456 = scalar_lea.vmem %s3, %s455
      %p457 = scmp.lt.s32.totalorder %s23, 1
      %s458 = scalar_select %p457, %s23, 1
      %s459 = smul.addr %s458, 8
      %s460 = smul.addr %s459, 4
      %s461 = scalar_lea.vmem %s12, %s460
      %v462 = vld [vmem:[%s456] sm:$0xff]
      %v463 = vld [vmem:[%s444] sm:$0xff]
      %v464 = vld [vmem:[%s4] sm:$0x3f]
      %v465 = vld [vmem:[%s5] sm:$0x1]
      %v467 = vlaneseq
      %v468 = vshrl.u32 %v467, 7
      %v469 = vsub.s32 0, %v468
      %v470 = vrot.slane %v465, %v469
      %vm472 = vcmask 48128
      %v474 = vsel %vm472, %v463, 0
      %vm476 = vcmask 1045504
      %v478 = vsel %vm476, %v464, 0
      %480 = vmatprep.subr.mxu0 0.0
      %481 = vmatpush1.msra.mxu0 0.0
      %482 = vmatprep.subr.mxu0 0.0
      %483 = vmatpush1.msra.mxu0 0.0
      %484 = vmatprep.subr.mxu0 0.0
      %485 = vmatpush1.msra.mxu0 0.0
      %486 = vmatprep.subr.mxu0 0.0
      %487 = vmatpush1.msra.mxu0 0.0
      %488 = vmatprep.subr.mxu0 0.0
      %489 = vmatpush1.msra.mxu0 0.0
      %490 = vmatprep.subr.mxu0 0.0
      %491 = vmatpush1.msra.mxu0 0.0
      %492 = vmatprep.subr.mxu0 0.0
      %493 = vmatpush1.msra.mxu0 0.0
      %494 = vmatprep.subr.mxu0 0.0
      %495 = vmatpush1.msra.mxu0 0.0
      %496 = vmatprep.subr.mxu0 0.0
      %497 = vmatpush1.msra.mxu0 0.0
      %498 = vmatprep.subr.mxu0 0.0
      %499 = vmatpush1.msra.mxu0 0.0
      %500 = vmatprep.subr.mxu0 0.0
      %501 = vmatpush1.msra.mxu0 0.0
      %502 = vmatprep.subr.mxu0 0.0
      %503 = vmatpush1.msra.mxu0 0.0
      %504 = vmatprep.subr.mxu0 0.0
      %505 = vmatpush1.msra.mxu0 0.0
      %506 = vmatprep.subr.mxu0 0.0
      %507 = vmatpush1.msra.mxu0 0.0
      %508 = vmatprep.subr.mxu0 0.0
      %509 = vmatpush1.msra.mxu0 0.0
      %510 = vmatprep.subr.mxu0 0.0
      %511 = vmatpush1.msra.mxu0 %v478
      %512 = vmatprep.subr.mxu0 0.0
      %513 = vmatpush2.msra.mxu0 0.0
      %514 = vmatprep.subr.mxu0 0.0
      %515 = vmatpush2.msra.mxu0 0.0
      %516 = vmatprep.subr.mxu0 0.0
      %517 = vmatpush2.msra.mxu0 0.0
      %518 = vmatprep.subr.mxu0 0.0
      %519 = vmatpush2.msra.mxu0 0.0
      %520 = vmatprep.subr.mxu0 0.0
      %521 = vmatpush2.msra.mxu0 0.0
      %522 = vmatprep.subr.mxu0 0.0
      %523 = vmatpush2.msra.mxu0 0.0
      %524 = vmatprep.subr.mxu0 0.0
      %525 = vmatpush2.msra.mxu0 0.0
      %526 = vmatprep.subr.mxu0 0.0
      %527 = vmatpush2.msra.mxu0 0.0
      %528 = vmatprep.subr.mxu0 0.0
      %529 = vmatpush2.msra.mxu0 0.0
      %530 = vmatprep.subr.mxu0 0.0
      %531 = vmatpush2.msra.mxu0 0.0
      %532 = vmatprep.subr.mxu0 0.0
      %533 = vmatpush2.msra.mxu0 0.0
      %534 = vmatprep.subr.mxu0 0.0
      %535 = vmatpush2.msra.mxu0 0.0
      %536 = vmatprep.subr.mxu0 0.0
      %537 = vmatpush2.msra.mxu0 0.0
      %538 = vmatprep.subr.mxu0 0.0
      %539 = vmatpush2.msra.mxu0 0.0
      %540 = vmatprep.subr.mxu0 0.0
      %541 = vmatpush2.msra.mxu0 0.0
      %542 = vmatprep.subr.mxu0 0.0
      %543 = vmatpush2.msra.mxu0 0.0
      %544 = vmatprep.mubr.f32.mxu0 0.0
      %545 = vmatmul.mubr.f32.gmra.mxu0 %v474
      %v546 = vpop.f32.mrf.mxu0
      %v547 = vadd.f32 %v470, %v546
      %v548 = vpop.f32.mrf.mxu0
      %549 = vdwg.mxu0
      %v550 = vadd.f32 %v547, %v462
      %v551 = vld [vmem:[%s448] sm:$0xff]
      %v552 = vld [vmem:[%s6] sm:$0x7]
      %v553 = vld [vmem:[%s7] sm:$0x1]
      %v555 = vlaneseq
      %v556 = vshrl.u32 %v555, 7
      %v557 = vsub.s32 0, %v556
      %v558 = vrot.slane %v553, %v557
      %vm560 = vcmask 23552
      %v562 = vsel %vm560, %v551, 0
      %vm564 = vcmask 1042432
      %v566 = vsel %vm564, %v552, 0
      %568 = vmatprep.subr.mxu0 0.0
      %569 = vmatpush1.msra.mxu0 0.0
      %570 = vmatprep.subr.mxu0 0.0
      %571 = vmatpush1.msra.mxu0 0.0
      %572 = vmatprep.subr.mxu0 0.0
      %573 = vmatpush1.msra.mxu0 0.0
      %574 = vmatprep.subr.mxu0 0.0
      %575 = vmatpush1.msra.mxu0 0.0
      %576 = vmatprep.subr.mxu0 0.0
      %577 = vmatpush1.msra.mxu0 0.0
      %578 = vmatprep.subr.mxu0 0.0
      %579 = vmatpush1.msra.mxu0 0.0
      %580 = vmatprep.subr.mxu0 0.0
      %581 = vmatpush1.msra.mxu0 0.0
      %582 = vmatprep.subr.mxu0 0.0
      %583 = vmatpush1.msra.mxu0 0.0
      %584 = vmatprep.subr.mxu0 0.0
      %585 = vmatpush1.msra.mxu0 0.0
      %586 = vmatprep.subr.mxu0 0.0
      %587 = vmatpush1.msra.mxu0 0.0
      %588 = vmatprep.subr.mxu0 0.0
      %589 = vmatpush1.msra.mxu0 0.0
      %590 = vmatprep.subr.mxu0 0.0
      %591 = vmatpush1.msra.mxu0 0.0
      %592 = vmatprep.subr.mxu0 0.0
      %593 = vmatpush1.msra.mxu0 0.0
      %594 = vmatprep.subr.mxu0 0.0
      %595 = vmatpush1.msra.mxu0 0.0
      %596 = vmatprep.subr.mxu0 0.0
      %597 = vmatpush1.msra.mxu0 0.0
      %598 = vmatprep.subr.mxu0 0.0
      %599 = vmatpush1.msra.mxu0 %v566
      %600 = vmatprep.subr.mxu0 0.0
      %601 = vmatpush2.msra.mxu0 0.0
      %602 = vmatprep.subr.mxu0 0.0
      %603 = vmatpush2.msra.mxu0 0.0
      %604 = vmatprep.subr.mxu0 0.0
      %605 = vmatpush2.msra.mxu0 0.0
      %606 = vmatprep.subr.mxu0 0.0
      %607 = vmatpush2.msra.mxu0 0.0
      %608 = vmatprep.subr.mxu0 0.0
      %609 = vmatpush2.msra.mxu0 0.0
      %610 = vmatprep.subr.mxu0 0.0
      %611 = vmatpush2.msra.mxu0 0.0
      %612 = vmatprep.subr.mxu0 0.0
      %613 = vmatpush2.msra.mxu0 0.0
      %614 = vmatprep.subr.mxu0 0.0
      %615 = vmatpush2.msra.mxu0 0.0
      %616 = vmatprep.subr.mxu0 0.0
      %617 = vmatpush2.msra.mxu0 0.0
      %618 = vmatprep.subr.mxu0 0.0
      %619 = vmatpush2.msra.mxu0 0.0
      %620 = vmatprep.subr.mxu0 0.0
      %621 = vmatpush2.msra.mxu0 0.0
      %622 = vmatprep.subr.mxu0 0.0
      %623 = vmatpush2.msra.mxu0 0.0
      %624 = vmatprep.subr.mxu0 0.0
      %625 = vmatpush2.msra.mxu0 0.0
      %626 = vmatprep.subr.mxu0 0.0
      %627 = vmatpush2.msra.mxu0 0.0
      %628 = vmatprep.subr.mxu0 0.0
      %629 = vmatpush2.msra.mxu0 0.0
      %630 = vmatprep.subr.mxu0 0.0
      %631 = vmatpush2.msra.mxu0 0.0
      %632 = vmatprep.mubr.f32.mxu0 0.0
      %633 = vmatmul.mubr.f32.gmra.mxu0 %v562
      %v634 = vpop.f32.mrf.mxu0
      %v635 = vadd.f32 %v558, %v634
      %v636 = vpop.f32.mrf.mxu0
      %637 = vdwg.mxu0
      %v638 = vadd.f32 %v635, %v462
      %v639 = vld [vmem:[%s452] sm:$0xff]
      %v640 = vld [vmem:[%s8] sm:$0x1]
      %642 = vset.pattern.permute.xlu0 0
      %643 = vperm.xlu0 %642, %v639
      %v644 = vpop.permute.xlu0 %643
      %v647 = vlaneseq
      %v648 = vshrl.u32 %v647, 7
      %v649 = vsub.s32 0, %v648
      %v650 = vrot.slane %v640, %v649
      %v652 = vmul.f32 %v644, %v650
      %v653 = vld [vmem:[%s9] sm:$0x1]
      %v655 = vlaneseq
      %v656 = vshrl.u32 %v655, 7
      %v657 = vsub.s32 0, %v656
      %v658 = vrot.slane %v653, %v657
      %v660 = vadd.f32 %v652, %v658
      %v661 = vadd.f32 %v660, %v462
      %v662 = vld [vmem:[%s10] sm:$0x1]
      %v663 = vld [vmem:[%s11] sm:$0x1]
      %vm664 = vcmask 261120
      %v665 = vsel %vm664, %v550, 0.0
      %666 = vadd.xlane.f32.xlu0 %v665
      %v667 = vpop.xlane.xlu0 %666
      %v668 = vrcp.pop 32.0
      %v669 = vmul.f32 %v667, %v668
      %v670 = vsub.f32 %v550, %v669
      %v671 = vmul.f32 %v670, %v670
      %v672 = vsel %vm664, %v671, 0.0
      %673 = vadd.xlane.f32.xlu0 %v672
      %v674 = vpop.xlane.xlu0 %673
      %v675 = vmul.f32 %v674, %v668
      %v676 = vadd.f32 %v675, 1e-05
      %v677 = vrsqrt.pop %v676
      %v678 = vmul.f32 %v670, %v677
      %v680 = vlaneseq
      %v681 = vshrl.u32 %v680, 7
      %v682 = vsub.s32 0, %v681
      %v683 = vrot.slane %v662, %v682
      %v685 = vmul.f32 %v678, %v683
      %v687 = vlaneseq
      %v688 = vshrl.u32 %v687, 7
      %v689 = vsub.s32 0, %v688
      %v690 = vrot.slane %v663, %v689
      %v692 = vadd.f32 %v685, %v690
      %v693 = vsel %vm664, %v661, 0.0
      %694 = vadd.xlane.f32.xlu0 %v693
      %v695 = vpop.xlane.xlu0 %694
      %v696 = vmul.f32 %v695, %v668
      %v697 = vsub.f32 %v661, %v696
      %v698 = vmul.f32 %v697, %v697
      %v699 = vsel %vm664, %v698, 0.0
      %700 = vadd.xlane.f32.xlu0 %v699
      %v701 = vpop.xlane.xlu0 %700
      %v702 = vmul.f32 %v701, %v668
      %v703 = vadd.f32 %v702, 1e-05
      %v704 = vrsqrt.pop %v703
      %v705 = vmul.f32 %v697, %v704
      %v706 = vmul.f32 %v705, %v683
      %v707 = vadd.f32 %v706, %v690
      %v708 = vsel %vm664, %v638, 0.0
      %709 = vadd.xlane.f32.xlu0 %v708
      %v710 = vpop.xlane.xlu0 %709
      %v711 = vmul.f32 %v710, %v668
      %v712 = vsub.f32 %v638, %v711
      %v713 = vmul.f32 %v712, %v712
      %v714 = vsel %vm664, %v713, 0.0
      %715 = vadd.xlane.f32.xlu0 %v714
      %v716 = vpop.xlane.xlu0 %715
      %v717 = vmul.f32 %v716, %v668
      %v718 = vadd.f32 %v717, 1e-05
      %v719 = vrsqrt.pop %v718
      %v720 = vmul.f32 %v712, %v719
      %v721 = vmul.f32 %v720, %v683
      %v722 = vadd.f32 %v721, %v690
      %v724 = vcombine.high %v692, %v692
      %v726 = vunpack.c.l.s4 1966171168
      %v727 = vunpack.c.0.s8 %v726
      %v728 = vlaneseq
      %v729 = vshrl.u32 %v728, 7
      %v730 = vsub.s32 %v727, %v729
      %v731 = vrot.slane %v692, %v730
      %v733 = vunpack.c.l.s4 1966171168
      %v734 = vunpack.c.0.s8 %v733
      %v735 = vlaneseq
      %v736 = vshrl.u32 %v735, 7
      %v737 = vsub.s32 %v734, %v736
      %v738 = vrot.slane %v724, %v737
      %v739 = vcombine.high %v731, %v731
      %v740 = vcombine.high %v738, %v738
      %v742 = vunpack.c.l.s4 1966171168
      %v743 = vunpack.c.0.s8 %v742
      %v744 = vlaneseq
      %v745 = vshrl.u32 %v744, 7
      %v746 = vsub.s32 %v743, %v745
      %v747 = vrot.slane %v731, %v746
      %v749 = vunpack.c.l.s4 1966171168
      %v750 = vunpack.c.0.s8 %v749
      %v751 = vlaneseq
      %v752 = vshrl.u32 %v751, 7
      %v753 = vsub.s32 %v750, %v752
      %v754 = vrot.slane %v738, %v753
      %v756 = vunpack.c.l.s4 1966171168
      %v757 = vunpack.c.0.s8 %v756
      %v758 = vlaneseq
      %v759 = vshrl.u32 %v758, 7
      %v760 = vsub.s32 %v757, %v759
      %v761 = vrot.slane %v739, %v760
      %v763 = vunpack.c.l.s4 1966171168
      %v764 = vunpack.c.0.s8 %v763
      %v765 = vlaneseq
      %v766 = vshrl.u32 %v765, 7
      %v767 = vsub.s32 %v764, %v766
      %v768 = vrot.slane %v740, %v767
      %v769 = vcombine.high %v747, %v747
      %v770 = vcombine.high %v754, %v754
      %v771 = vcombine.high %v761, %v761
      %v772 = vcombine.high %v768, %v768
      %v782 = vcombine.high %v707, %v707
      %v784 = vunpack.c.l.s4 1966171168
      %v785 = vunpack.c.0.s8 %v784
      %v786 = vlaneseq
      %v787 = vshrl.u32 %v786, 7
      %v788 = vsub.s32 %v785, %v787
      %v789 = vrot.slane %v707, %v788
      %v791 = vunpack.c.l.s4 1966171168
      %v792 = vunpack.c.0.s8 %v791
      %v793 = vlaneseq
      %v794 = vshrl.u32 %v793, 7
      %v795 = vsub.s32 %v792, %v794
      %v796 = vrot.slane %v782, %v795
      %v797 = vcombine.high %v789, %v789
      %v798 = vcombine.high %v796, %v796
      %v800 = vunpack.c.l.s4 1966171168
      %v801 = vunpack.c.0.s8 %v800
      %v802 = vlaneseq
      %v803 = vshrl.u32 %v802, 7
      %v804 = vsub.s32 %v801, %v803
      %v805 = vrot.slane %v789, %v804
      %v807 = vunpack.c.l.s4 1966171168
      %v808 = vunpack.c.0.s8 %v807
      %v809 = vlaneseq
      %v810 = vshrl.u32 %v809, 7
      %v811 = vsub.s32 %v808, %v810
      %v812 = vrot.slane %v796, %v811
      %v814 = vunpack.c.l.s4 1966171168
      %v815 = vunpack.c.0.s8 %v814
      %v816 = vlaneseq
      %v817 = vshrl.u32 %v816, 7
      %v818 = vsub.s32 %v815, %v817
      %v819 = vrot.slane %v797, %v818
      %v821 = vunpack.c.l.s4 1966171168
      %v822 = vunpack.c.0.s8 %v821
      %v823 = vlaneseq
      %v824 = vshrl.u32 %v823, 7
      %v825 = vsub.s32 %v822, %v824
      %v826 = vrot.slane %v798, %v825
      %v827 = vcombine.high %v805, %v805
      %v828 = vcombine.high %v812, %v812
      %v829 = vcombine.high %v819, %v819
      %v830 = vcombine.high %v826, %v826
      %v832 = vcombine.high %v722, %v722
      %v834 = vunpack.c.l.s4 1966171168
      %v835 = vunpack.c.0.s8 %v834
      %v836 = vlaneseq
      %v837 = vshrl.u32 %v836, 7
      %v838 = vsub.s32 %v835, %v837
      %v839 = vrot.slane %v722, %v838
      %v841 = vunpack.c.l.s4 1966171168
      %v842 = vunpack.c.0.s8 %v841
      %v843 = vlaneseq
      %v844 = vshrl.u32 %v843, 7
      %v845 = vsub.s32 %v842, %v844
      %v846 = vrot.slane %v832, %v845
      %v847 = vcombine.high %v839, %v839
      %v848 = vcombine.high %v846, %v846
      %v850 = vunpack.c.l.s4 1966171168
      %v851 = vunpack.c.0.s8 %v850
      %v852 = vlaneseq
      %v853 = vshrl.u32 %v852, 7
      %v854 = vsub.s32 %v851, %v853
      %v855 = vrot.slane %v839, %v854
      %v857 = vunpack.c.l.s4 1966171168
      %v858 = vunpack.c.0.s8 %v857
      %v859 = vlaneseq
      %v860 = vshrl.u32 %v859, 7
      %v861 = vsub.s32 %v858, %v860
      %v862 = vrot.slane %v846, %v861
      %v864 = vunpack.c.l.s4 1966171168
      %v865 = vunpack.c.0.s8 %v864
      %v866 = vlaneseq
      %v867 = vshrl.u32 %v866, 7
      %v868 = vsub.s32 %v865, %v867
      %v869 = vrot.slane %v847, %v868
      %v871 = vunpack.c.l.s4 1966171168
      %v872 = vunpack.c.0.s8 %v871
      %v873 = vlaneseq
      %v874 = vshrl.u32 %v873, 7
      %v875 = vsub.s32 %v872, %v874
      %v876 = vrot.slane %v848, %v875
      %v877 = vcombine.high %v855, %v855
      %v878 = vcombine.high %v862, %v862
      %v879 = vcombine.high %v869, %v869
      %v880 = vcombine.high %v876, %v876
      %v881 = vlaneseq
      %v882 = vshrl.u32 %v881, 7
      %v883 = vsub.s32 0, %v882
      %v884 = vrot.slane %v805, %v883
      %v885 = vlaneseq
      %v886 = vshrl.u32 %v885, 7
      %v887 = vsub.s32 0, %v886
      %v888 = vrot.slane %v819, %v887
      %v889 = vlaneseq
      %v890 = vshrl.u32 %v889, 7
      %v891 = vsub.s32 0, %v890
      %v892 = vrot.slane %v827, %v891
      %v893 = vlaneseq
      %v894 = vshrl.u32 %v893, 7
      %v895 = vsub.s32 0, %v894
      %v896 = vrot.slane %v829, %v895
      %v897 = vlaneseq
      %v898 = vshrl.u32 %v897, 7
      %v899 = vsub.s32 0, %v898
      %v900 = vrot.slane %v812, %v899
      %v901 = vlaneseq
      %v902 = vshrl.u32 %v901, 7
      %v903 = vsub.s32 0, %v902
      %v904 = vrot.slane %v826, %v903
      %v905 = vlaneseq
      %v906 = vshrl.u32 %v905, 7
      %v907 = vsub.s32 0, %v906
      %v908 = vrot.slane %v828, %v907
      %v909 = vlaneseq
      %v910 = vshrl.u32 %v909, 7
      %v911 = vsub.s32 0, %v910
      %v912 = vrot.slane %v830, %v911
      %v921 = vlaneseq
      %v922 = vshrl.u32 %v921, 7
      %v923 = vsub.s32 0, %v922
      %v924 = vrot.slane %v855, %v923
      %v925 = vlaneseq
      %v926 = vshrl.u32 %v925, 7
      %v927 = vsub.s32 0, %v926
      %v928 = vrot.slane %v869, %v927
      %v929 = vlaneseq
      %v930 = vshrl.u32 %v929, 7
      %v931 = vsub.s32 0, %v930
      %v932 = vrot.slane %v877, %v931
      %v933 = vlaneseq
      %v934 = vshrl.u32 %v933, 7
      %v935 = vsub.s32 0, %v934
      %v936 = vrot.slane %v879, %v935
      %v937 = vlaneseq
      %v938 = vshrl.u32 %v937, 7
      %v939 = vsub.s32 0, %v938
      %v940 = vrot.slane %v862, %v939
      %v941 = vlaneseq
      %v942 = vshrl.u32 %v941, 7
      %v943 = vsub.s32 0, %v942
      %v944 = vrot.slane %v876, %v943
      %v945 = vlaneseq
      %v946 = vshrl.u32 %v945, 7
      %v947 = vsub.s32 0, %v946
      %v948 = vrot.slane %v878, %v947
      %v949 = vlaneseq
      %v950 = vshrl.u32 %v949, 7
      %v951 = vsub.s32 0, %v950
      %v952 = vrot.slane %v880, %v951
      %vm961 = vcmask 1040384
      %v962 = vsel %vm961, %v747, %v884
      %v963 = vsel %vm961, %v761, %v888
      %v964 = vsel %vm961, %v769, %v892
      %v965 = vsel %vm961, %v771, %v896
      %v966 = vsel %vm961, %v754, %v900
      %v967 = vsel %vm961, %v768, %v904
      %v968 = vsel %vm961, %v770, %v908
      %v969 = vsel %vm961, %v772, %v912
      %vm970 = vcmask 1041408
      %v971 = vsel %vm970, %v962, %v924
      %v972 = vsel %vm970, %v963, %v928
      %v973 = vsel %vm970, %v964, %v932
      %v974 = vsel %vm970, %v965, %v936
      %v975 = vsel %vm970, %v966, %v940
      %v976 = vsel %vm970, %v967, %v944
      %v977 = vsel %vm970, %v968, %v948
      %v978 = vsel %vm970, %v969, %v952
      %vm979 = vcmask 256000
      %980 = vst.msk [vmem:[%s461] sm:$0x7] %vm979, %v971
      %981 = vst.msk [vmem:[%s461 + $0x4] sm:$0x7] %vm979, %v972
      %982 = vst.msk [vmem:[%s461 + $0x8] sm:$0x7] %vm979, %v973
      %983 = vst.msk [vmem:[%s461 + $0xc] sm:$0x7] %vm979, %v974
      %984 = vst.msk [vmem:[%s461 + $0x10] sm:$0x7] %vm979, %v975
      %985 = vst.msk [vmem:[%s461 + $0x14] sm:$0x7] %vm979, %v976
      %986 = vst.msk [vmem:[%s461 + $0x18] sm:$0x7] %vm979, %v977
      %987 = vst.msk [vmem:[%s461 + $0x1c] sm:$0x7] %vm979, %v978
      %p988 = scmp.lt.s32.totalorder %s23, 1
      %s989 = scalar_select %p988, %s23, 1
      %s990 = smul.addr %s989, 8
      %s991 = smul.addr %s990, 4
      %s992 = scalar_lea.vmem %s12, %s991
      // Predicated region
      $region69: #{tpu_custom_call.1} parent=67 // pred_check
        %p993 = pneg %p313
      $region70: #{tpu_custom_call.1} parent=67 // pred_check_branch
        %995 = sbr.rel (%p993) target = $region72
      $region71: #{tpu_custom_call.1} parent=67 // pred_region
        _
      $region72: #{tpu_custom_call.1} parent=67 // pred_fallthru
        _
    $region68: #{tpu_custom_call.1} parent=5 // pred_fallthru
      _
    %p996 = scmp.le.s32.totalorder 2, %s18
    // Predicated region
    $region73: #{tpu_custom_call.1} parent=5 // pred_check
      %p997 = pneg %p996
    $region74: #{tpu_custom_call.1} parent=5 // pred_check_branch
      %999 = sbr.rel (%p997) target = $region76
    $region75: #{tpu_custom_call.1} parent=5 // pred_region
      %s1000 = ssub.s32 %s18, 2
      // Predicated region
      $region77: #{tpu_custom_call.1} parent=75 // pred_check
        %p1001 = pneg %p319
      $region78: #{tpu_custom_call.1} parent=75 // pred_check_branch
        %1003 = sbr.rel (%p1001) target = $region80
      $region79: #{tpu_custom_call.1} parent=75 // pred_region
        %p1004 = scmp.lt.s32.totalorder %s24, 1
        %s1005 = scalar_select %p1004, %s24, 1
        %s1006 = smul.addr %s1005, 8
        %s1007 = smul.addr %s1006, 4
        %s1008 = scalar_lea.vmem %s12, %s1007
      $region80: #{tpu_custom_call.1} parent=75 // pred_fallthru
        _
    $region76: #{tpu_custom_call.1} parent=5 // pred_fallthru
      _
  $region6: #{tpu_custom_call.1} parent=0 // loop_footer
    %s22 = sadd.s32 1, %s18
  $region7: #{tpu_custom_call.1} parent=0 // loop_footer_branch
    %17 = sbr.rel target = $region3
  $region8: #{tpu_custom_call.1} parent=0 // loop_exit
    _

</llo_original>
